<compile_context>
chip_gen: v7x
topology: tpu7x:2x2x1
jax: 0.10.0
libtpu: 0.0.40
codegen_flags: <defaults>
</compile_context>

<pallas_src>
import functools

import jax
import jax.numpy as jnp
import numpy as np
from jax.experimental import pallas as pl
from jax.experimental.pallas import tpu as pltpu


def _bahdanau_kernel(dec_ref, enc_ref, wt_ref, bw_ref, ut_ref, bu_ref, v_ref,
                     ctx_ref, attn_ref, *, tanh_dtype):
    # Per grid step (TB batch rows):
    #   dec_ref : (TB, 1, E)   enc_ref : (TB, S, D)
    #   wt_ref  : (E, D)       bw_ref  : (1, D)      (W_attn, pre-transposed, NN form)
    #   ut_ref  : (D, D)       bu_ref  : (1, D)      (U_attn, pre-transposed, NN form)
    #   v_ref   : (1, D)                             (V_attn weight; bias dropped)
    #   ctx_ref : (TB, 1, D)   attn_ref: (TB, 1, S)
    f32 = jnp.float32
    TB, S, D = enc_ref.shape
    E = dec_ref.shape[-1]

    dec = dec_ref[...].reshape(TB, E)                                   # (TB, E)
    enc = enc_ref[...]                                                  # (TB, S, D)

    # query = dec @ W^T + bW        -> (TB, D)       one MXU matmul
    q = jnp.dot(dec, wt_ref[...], preferred_element_type=f32) + bw_ref[...]

    # values = enc @ U^T + bU       -> (TB, S, D)    ONE (TB*S, D)@(D, D) MXU matmul
    vals = jnp.dot(enc.reshape(TB * S, D), ut_ref[...],
                   preferred_element_type=f32).reshape(TB, S, D) + bu_ref[...]

    # energy = tanh(query + values)  (EUP; bf16 on v6e/v7x, f32 on v5e)
    energy = jnp.tanh((q[:, None, :] + vals).astype(tanh_dtype))        # (TB, S, D)

    # scores = <V, energy> over D   -> (TB, S)   (VPU mul + lane reduce; result is
    # already lane-dense with S on lanes).  V_attn bias is dropped: softmax is
    # shift-invariant, so adding bV is bit-identical dead work.
    scores = jnp.sum((energy * v_ref[...].astype(energy.dtype)).astype(f32),
                     axis=-1)                                           # (TB, S)

    # softmax over S (lane axis); exact normalization (denominator is a tiny column).
    m = jnp.max(scores, axis=-1, keepdims=True)
    p = jnp.exp(scores - m)
    attn = p / jnp.sum(p, axis=-1, keepdims=True)                       # (TB, S) f32

    # context = attn @ enc          -> (TB, 1, D)    batched (1,S)@(S,D) MXU matmul.
    # NOTE: attn is cast to the enc storage dtype for the MXU; the returned
    # attention weights stay f32 (slight precision asymmetry in the bf16 path).
    attn3 = attn[:, None, :]                                            # (TB, 1, S)
    ctx = jnp.einsum('bqs,bsd->bqd', attn3.astype(enc.dtype), enc,
                     preferred_element_type=f32)                        # (TB, 1, D)

    ctx_ref[...] = ctx
    attn_ref[...] = attn3


def bahdanau_attention(dec_input, enc_outputs, params, *,
                       compute_dtype=jnp.bfloat16, block_batch=None):
    """dec_input: (B, 1, E), enc_outputs: (B, S, D).
    params = (W (D,E), bW (D,), U (D,D), bU (D,), V (1,D), bV (1,)).
    Returns (context (B, 1, D) f32, attention_weights (B, S) f32)."""
    W, bW, U, bU, V, bV = params
    del bV  # softmax is shift-invariant -> V_attn bias is a mathematical no-op
    B, S, D = enc_outputs.shape
    E = dec_input.shape[-1]
    compute_dtype = jnp.dtype(compute_dtype)

    # bf16 transcendentals only on chips with a packed-bf16 EUP (v6e / v7x);
    # v5e and older keep f32 (no bf16 VPU/EUP -> casting would be pure overhead).
    try:
        kind = jax.devices()[0].device_kind.lower()
    except Exception:
        kind = ""
    old_gen = any(t in kind for t in ("v2", "v3", "v4", "v5"))
    tanh_dtype = (jnp.bfloat16
                  if (compute_dtype == jnp.dtype(jnp.bfloat16) and not old_gen)
                  else jnp.float32)

    # Per-generation VMEM budgeting.
    try:
        phys_vmem = int(pltpu.get_tpu_info().vmem_capacity_bytes)
    except Exception:
        phys_vmem = 64 * 1024 * 1024        # conservative (v7x-sized) fallback

    isz = compute_dtype.itemsize
    tanh_isz = jnp.dtype(tanh_dtype).itemsize
    # Resident (grid-invariant) weights -- double-buffered by the pipeline today.
    resident = 2 * ((E * D + D * D + 3 * D) * isz + 2 * D * 4) + (1 << 20)
    # Per batch-row footprint: double-buffered enc/dec/output tiles + f32 temporaries.
    per_elem = (2 * S * D * isz            # enc tile (double buffer)
                + 2 * E * isz              # dec tile
                + 2 * (D + S) * 4          # ctx / attn output tiles
                + S * D * (8 + tanh_isz)   # f32 vals + (q+vals) temp + energy
                + 4 * S * 4)               # scores / softmax rows

    tile_budget = int(phys_vmem * 2 // 5)  # conservative working-set target
    divisors = [d for d in range(1, B + 1) if B % d == 0]
    fitting = [d for d in divisors if resident + d * per_elem <= tile_budget] or [1]
    # Prefer >=2 grid steps (v7x megacore) but never at the cost of tiny blocks.
    multi = [d for d in fitting if (B // d) >= 2 and d >= 8]
    TB = max(multi) if multi else max(fitting)
    if block_batch is not None:
        assert B % block_batch == 0, "block_batch must divide the batch size"
        TB = block_batch

    vmem_limit = min(int(phys_vmem * 0.9),
                     max(int(phys_vmem * 3 // 4),
                         resident + TB * per_elem + (8 << 20)))

    # One-time (free) host-side layout prep: NN-form weights, f32 biases.
    dec = dec_input.astype(compute_dtype)               # (B, 1, E)
    enc = enc_outputs.astype(compute_dtype)             # (B, S, D)
    wt = W.T.astype(compute_dtype)                      # (E, D)
    ut = U.T.astype(compute_dtype)                      # (D, D)
    v = V.reshape(1, D).astype(compute_dtype)           # (1, D)
    bw = bW.reshape(1, D).astype(jnp.float32)
    bu = bU.reshape(1, D).astype(jnp.float32)

    kernel = functools.partial(_bahdanau_kernel, tanh_dtype=tanh_dtype)
    const = lambda b: (0, 0)                            # resident weights / biases

    ctx, attn = pl.pallas_call(
        kernel,
        grid=(B // TB,),
        in_specs=[
            pl.BlockSpec((TB, 1, E), lambda b: (b, 0, 0)),   # dec_input
            pl.BlockSpec((TB, S, D), lambda b: (b, 0, 0)),   # enc_outputs
            pl.BlockSpec((E, D), const),                     # W_attn.weight (transposed)
            pl.BlockSpec((1, D), const),                     # W_attn.bias
            pl.BlockSpec((D, D), const),                     # U_attn.weight (transposed)
            pl.BlockSpec((1, D), const),                     # U_attn.bias
            pl.BlockSpec((1, D), const),                     # V_attn.weight
        ],
        out_specs=(
            pl.BlockSpec((TB, 1, D), lambda b: (b, 0, 0)),   # context
            pl.BlockSpec((TB, 1, S), lambda b: (b, 0, 0)),   # attention weights
        ),
        out_shape=(jax.ShapeDtypeStruct((B, 1, D), jnp.float32),
                   jax.ShapeDtypeStruct((B, 1, S), jnp.float32)),
        compiler_params=pltpu.CompilerParams(
            dimension_semantics=("parallel",),
            vmem_limit_bytes=int(vmem_limit)),
    )(dec, enc, wt, bw, ut, bu, v)

    return ctx, attn[:, 0, :]


def ref_forward(dec_input, enc_outputs, params):
    W, bW, U, bU, V, bV = params
    q = jnp.squeeze(dec_input, axis=1) @ W.T + bW                 # (B, D)
    vals = enc_outputs @ U.T + bU                                 # (B, S, D)
    energy = jnp.tanh(q[:, None, :] + vals)
    scores = jnp.squeeze(energy @ V.T, axis=-1) + bV[0]           # (B, S)
    weights = jax.nn.softmax(scores, axis=-1)
    ctx = jnp.einsum('bs,bsd->bd', weights, enc_outputs)[:, None, :]
    return ctx, weights


if __name__ == "__main__":
    B, S = 2, 8
    enc_dim, dec_dim = 16, 32   # E, D (Linear dims as in the module constructor)

    key = jax.random.PRNGKey(0)
    k = jax.random.split(key, 8)

    # nn.Linear-style deterministic init (uniform(-1/sqrt(fan_in), 1/sqrt(fan_in)))
    def lin_init(kw, kb, out_f, in_f):
        bound = 1.0 / np.sqrt(in_f)
        w = jax.random.uniform(kw, (out_f, in_f), jnp.float32, -bound, bound)
        b = jax.random.uniform(kb, (out_f,), jnp.float32, -bound, bound)
        return w, b

    W, bW = lin_init(k[0], k[1], dec_dim, enc_dim)   # W_attn: enc_dim -> dec_dim
    U, bU = lin_init(k[2], k[3], dec_dim, dec_dim)   # U_attn: dec_dim -> dec_dim
    V, bV = lin_init(k[4], k[5], 1, dec_dim)         # V_attn: dec_dim -> 1
    params = (W, bW, U, bU, V, bV)

    # NOTE: per the module's algebra, dec_input features = enc_dim and
    # enc_outputs features = dec_dim (W/U are applied "swapped" in the source).
    dec_input = jax.random.normal(k[6], (B, 1, enc_dim), jnp.float32)
    enc_outputs = jax.random.normal(k[7], (B, S, dec_dim), jnp.float32)

    ctx_ref_v, attn_ref_v = ref_forward(dec_input, enc_outputs, params)

    # f32 storage path: tight tolerance (exact softmax; bV drop is bit-identical).
    ctx32, attn32 = jax.block_until_ready(
        bahdanau_attention(dec_input, enc_outputs, params, compute_dtype=jnp.float32))
    assert ctx32.shape == (B, 1, dec_dim) and attn32.shape == (B, S)
    np.testing.assert_allclose(np.asarray(ctx32), np.asarray(ctx_ref_v), rtol=1e-3, atol=1e-3)
    np.testing.assert_allclose(np.asarray(attn32), np.asarray(attn_ref_v), rtol=1e-3, atol=1e-3)

    # Default bf16 storage path (halves HBM traffic; f32 accumulation/softmax/outputs).
    ctx16, attn16 = jax.block_until_ready(
        bahdanau_attention(dec_input, enc_outputs, params))
    assert ctx16.shape == (B, 1, dec_dim) and attn16.shape == (B, S)
    np.testing.assert_allclose(np.asarray(ctx16), np.asarray(ctx_ref_v), rtol=5e-2, atol=5e-2)
    np.testing.assert_allclose(np.asarray(attn16), np.asarray(attn_ref_v), rtol=5e-2, atol=5e-2)

    print("KERNEL_OK")
</pallas_src>

<mosaic_0001>
module attributes {stable_mosaic.version = 11 : i64} {
  func.func @_bahdanau_kernel(%arg0: i32, %arg1: memref<2x1x16xf32, #tpu.memory_space<vmem>>, %arg2: memref<2x8x32xf32, #tpu.memory_space<vmem>>, %arg3: memref<16x32xf32, #tpu.memory_space<vmem>>, %arg4: memref<1x32xf32, #tpu.memory_space<vmem>>, %arg5: memref<32x32xf32, #tpu.memory_space<vmem>>, %arg6: memref<1x32xf32, #tpu.memory_space<vmem>>, %arg7: memref<1x32xf32, #tpu.memory_space<vmem>>, %arg8: memref<2x1x32xf32, #tpu.memory_space<vmem>>, %arg9: memref<2x1x8xf32, #tpu.memory_space<vmem>>) attributes {dimension_semantics = [#tpu.dimension_semantics<parallel>], iteration_bounds = array<i64: 1>, scalar_prefetch = 0 : i64, scratch_operands = 0 : i64, tpu.core_type = #tpu.core_type<tc>, window_params = [{transform_indices = @transform_0, window_bounds = array<i64: 2, 1, 16>}, {transform_indices = @transform_1, window_bounds = array<i64: 2, 8, 32>}, {pipeline_mode = #tpu.pipeline_mode<synchronous>, transform_indices = @transform_2, window_bounds = array<i64: 16, 32>}, {pipeline_mode = #tpu.pipeline_mode<synchronous>, transform_indices = @transform_3, window_bounds = array<i64: 1, 32>}, {pipeline_mode = #tpu.pipeline_mode<synchronous>, transform_indices = @transform_4, window_bounds = array<i64: 32, 32>}, {pipeline_mode = #tpu.pipeline_mode<synchronous>, transform_indices = @transform_5, window_bounds = array<i64: 1, 32>}, {pipeline_mode = #tpu.pipeline_mode<synchronous>, transform_indices = @transform_6, window_bounds = array<i64: 1, 32>}, {transform_indices = @transform_7, window_bounds = array<i64: 2, 1, 32>}, {transform_indices = @transform_8, window_bounds = array<i64: 2, 1, 8>}]} {
    %c0 = arith.constant 0 : index
    %c0_0 = arith.constant 0 : index
    %c0_1 = arith.constant 0 : index
    %0 = vector.load %arg1[%c0, %c0_0, %c0_1] : memref<2x1x16xf32, #tpu.memory_space<vmem>>, vector<2x1x16xf32>
    %1 = vector.shape_cast %0 : vector<2x1x16xf32> to vector<2x16xf32>
    %c0_2 = arith.constant 0 : index
    %c0_3 = arith.constant 0 : index
    %c0_4 = arith.constant 0 : index
    %2 = vector.load %arg2[%c0_2, %c0_3, %c0_4] : memref<2x8x32xf32, #tpu.memory_space<vmem>>, vector<2x8x32xf32>
    %c0_5 = arith.constant 0 : index
    %c0_6 = arith.constant 0 : index
    %3 = vector.load %arg3[%c0_5, %c0_6] : memref<16x32xf32, #tpu.memory_space<vmem>>, vector<16x32xf32>
    %cst = arith.constant dense<0.000000e+00> : vector<2x32xf32>
    %4 = tpu.matmul %1, %3, %cst {dimension_numbers = #tpu.dot_dimension_numbers<[1], [0], [0], [1], [0, 0, 1, 1], [], []>} : vector<2x16xf32>, vector<16x32xf32>, vector<2x32xf32> -> vector<2x32xf32>
    %c0_7 = arith.constant 0 : index
    %c0_8 = arith.constant 0 : index
    %5 = vector.load %arg4[%c0_7, %c0_8] : memref<1x32xf32, #tpu.memory_space<vmem>>, vector<1x32xf32>
    %6 = vector.broadcast %5 : vector<1x32xf32> to vector<2x32xf32>
    %7 = arith.addf %4, %6 : vector<2x32xf32>
    %8 = vector.shape_cast %2 : vector<2x8x32xf32> to vector<16x32xf32>
    %c0_9 = arith.constant 0 : index
    %c0_10 = arith.constant 0 : index
    %9 = vector.load %arg5[%c0_9, %c0_10] : memref<32x32xf32, #tpu.memory_space<vmem>>, vector<32x32xf32>
    %cst_11 = arith.constant dense<0.000000e+00> : vector<16x32xf32>
    %10 = tpu.matmul %8, %9, %cst_11 {dimension_numbers = #tpu.dot_dimension_numbers<[1], [0], [0], [1], [0, 0, 1, 1], [], []>} : vector<16x32xf32>, vector<32x32xf32>, vector<16x32xf32> -> vector<16x32xf32>
    %11 = vector.shape_cast %10 : vector<16x32xf32> to vector<2x8x32xf32>
    %c0_12 = arith.constant 0 : index
    %c0_13 = arith.constant 0 : index
    %12 = vector.load %arg6[%c0_12, %c0_13] : memref<1x32xf32, #tpu.memory_space<vmem>>, vector<1x32xf32>
    %13 = vector.shape_cast %12 : vector<1x32xf32> to vector<1x1x32xf32>
    %14 = vector.broadcast %13 : vector<1x1x32xf32> to vector<2x8x32xf32>
    %15 = arith.addf %11, %14 : vector<2x8x32xf32>
    %16 = vector.shape_cast %7 : vector<2x32xf32> to vector<2x1x32xf32>
    %17 = vector.broadcast %16 : vector<2x1x32xf32> to vector<2x8x32xf32>
    %18 = arith.addf %17, %15 : vector<2x8x32xf32>
    %19 = math.tanh %18 : vector<2x8x32xf32>
    %c0_14 = arith.constant 0 : index
    %c0_15 = arith.constant 0 : index
    %20 = vector.load %arg7[%c0_14, %c0_15] : memref<1x32xf32, #tpu.memory_space<vmem>>, vector<1x32xf32>
    %21 = vector.shape_cast %20 : vector<1x32xf32> to vector<1x1x32xf32>
    %22 = vector.broadcast %21 : vector<1x1x32xf32> to vector<2x8x32xf32>
    %23 = arith.mulf %19, %22 : vector<2x8x32xf32>
    %cst_16 = arith.constant dense<0.000000e+00> : vector<2x8xf32>
    %24 = vector.multi_reduction <add>, %23, %cst_16 [2] : vector<2x8x32xf32> to vector<2x8xf32>
    %cst_17 = arith.constant dense<0xFF800000> : vector<2xf32>
    %25 = vector.multi_reduction <maximumf>, %24, %cst_17 [1] : vector<2x8xf32> to vector<2xf32>
    %26 = vector.shape_cast %25 : vector<2xf32> to vector<2x1xf32>
    %27 = vector.broadcast %26 : vector<2x1xf32> to vector<2x8xf32>
    %28 = arith.subf %24, %27 : vector<2x8xf32>
    %29 = math.exp %28 : vector<2x8xf32>
    %cst_18 = arith.constant dense<0.000000e+00> : vector<2xf32>
    %30 = vector.multi_reduction <add>, %29, %cst_18 [1] : vector<2x8xf32> to vector<2xf32>
    %31 = vector.shape_cast %30 : vector<2xf32> to vector<2x1xf32>
    %32 = vector.broadcast %31 : vector<2x1xf32> to vector<2x8xf32>
    %33 = arith.divf %29, %32 : vector<2x8xf32>
    %34 = vector.shape_cast %33 : vector<2x8xf32> to vector<2x1x8xf32>
    "tpu.trace_start"() <{level = 10 : i32, message = "bqs,bsd->bqd"}> : () -> ()
    %cst_19 = arith.constant dense<0.000000e+00> : vector<2x1x32xf32>
    %35 = tpu.matmul %34, %2, %cst_19 {dimension_numbers = #tpu.dot_dimension_numbers<[2], [1], [1], [2], [0, 0, 0, 1, 1, 2], [0], [0]>} : vector<2x1x8xf32>, vector<2x8x32xf32>, vector<2x1x32xf32> -> vector<2x1x32xf32>
    "tpu.trace_stop"() : () -> ()
    %c0_20 = arith.constant 0 : index
    %c0_21 = arith.constant 0 : index
    %c0_22 = arith.constant 0 : index
    %36 = vector.load %arg8[%c0_20, %c0_21, %c0_22] : memref<2x1x32xf32, #tpu.memory_space<vmem>>, vector<2x1x32xf32>
    tpu.vector_store %arg8[%c0_20, %c0_21, %c0_22], %35 {strides = array<i32>} : memref<2x1x32xf32, #tpu.memory_space<vmem>>, vector<2x1x32xf32>,
    %c0_23 = arith.constant 0 : index
    %c0_24 = arith.constant 0 : index
    %c0_25 = arith.constant 0 : index
    %37 = vector.load %arg9[%c0_23, %c0_24, %c0_25] : memref<2x1x8xf32, #tpu.memory_space<vmem>>, vector<2x1x8xf32>
    tpu.vector_store %arg9[%c0_23, %c0_24, %c0_25], %34 {strides = array<i32>} : memref<2x1x8xf32, #tpu.memory_space<vmem>>, vector<2x1x8xf32>,
    return
  }
  func.func @transform_0(%arg0: i32) -> (i32, i32, i32) {
    %c0_i32 = arith.constant 0 : i32
    %c0_i32_0 = arith.constant 0 : i32
    %c0_i32_1 = arith.constant 0 : i32
    return %arg0, %c0_i32, %c0_i32_0 : i32, i32, i32
  }
  func.func @transform_1(%arg0: i32) -> (i32, i32, i32) {
    %c0_i32 = arith.constant 0 : i32
    %c0_i32_0 = arith.constant 0 : i32
    %c0_i32_1 = arith.constant 0 : i32
    return %arg0, %c0_i32, %c0_i32_0 : i32, i32, i32
  }
  func.func @transform_2(%arg0: i32) -> (i32, i32) {
    %c0_i32 = arith.constant 0 : i32
    %c0_i32_0 = arith.constant 0 : i32
    %c0_i32_1 = arith.constant 0 : i32
    return %c0_i32, %c0_i32_0 : i32, i32
  }
  func.func @transform_3(%arg0: i32) -> (i32, i32) {
    %c0_i32 = arith.constant 0 : i32
    %c0_i32_0 = arith.constant 0 : i32
    %c0_i32_1 = arith.constant 0 : i32
    return %c0_i32, %c0_i32_0 : i32, i32
  }
  func.func @transform_4(%arg0: i32) -> (i32, i32) {
    %c0_i32 = arith.constant 0 : i32
    %c0_i32_0 = arith.constant 0 : i32
    %c0_i32_1 = arith.constant 0 : i32
    return %c0_i32, %c0_i32_0 : i32, i32
  }
  func.func @transform_5(%arg0: i32) -> (i32, i32) {
    %c0_i32 = arith.constant 0 : i32
    %c0_i32_0 = arith.constant 0 : i32
    %c0_i32_1 = arith.constant 0 : i32
    return %c0_i32, %c0_i32_0 : i32, i32
  }
  func.func @transform_6(%arg0: i32) -> (i32, i32) {
    %c0_i32 = arith.constant 0 : i32
    %c0_i32_0 = arith.constant 0 : i32
    %c0_i32_1 = arith.constant 0 : i32
    return %c0_i32, %c0_i32_0 : i32, i32
  }
  func.func @transform_7(%arg0: i32) -> (i32, i32, i32) {
    %c0_i32 = arith.constant 0 : i32
    %c0_i32_0 = arith.constant 0 : i32
    %c0_i32_1 = arith.constant 0 : i32
    return %arg0, %c0_i32, %c0_i32_0 : i32, i32, i32
  }
  func.func @transform_8(%arg0: i32) -> (i32, i32, i32) {
    %c0_i32 = arith.constant 0 : i32
    %c0_i32_0 = arith.constant 0 : i32
    %c0_i32_1 = arith.constant 0 : i32
    return %arg0, %c0_i32, %c0_i32_0 : i32, i32, i32
  }
}

</mosaic_0001>

<llo_original>
// kernel: tpu_custom_call.1
$region0: #{tpu_custom_call.1}
  #allocation0 [shape = 'u32[]', space=smem, size = 0x4, offset = 0x4, fixed_abs, tag = 'smem constant byte address 0x4 - core index']
  #allocation1 [shape = 'u32[144,128]{1,0:T(1,128)}', space=vmem, size = 0x12000, scoped, tag = 'internal scratch']
  %s0 = inlined_call_operand.hbm [shape: f32[2,1,16], index: 0, kind: input, shape index: {}]
  %s1 = inlined_call_operand.hbm [shape: f32[2,8,32], index: 1, kind: input, shape index: {}]
  %s2 = inlined_call_operand.hbm [shape: f32[16,32], index: 2, kind: input, shape index: {}]
  %s3 = inlined_call_operand.vmem [shape: f32[1,32], index: 3, kind: input, shape index: {}]
  %s4 = inlined_call_operand.hbm [shape: f32[32,32], index: 4, kind: input, shape index: {}]
  %s5 = inlined_call_operand.vmem [shape: f32[1,32], index: 5, kind: input, shape index: {}]
  %s6 = inlined_call_operand.vmem [shape: f32[1,32], index: 6, kind: input, shape index: {}]
  %s7 = inlined_call_operand.hbm [shape: f32[2,1,32], index: 7, kind: output, shape index: {0}]
  %s8 = inlined_call_operand.hbm [shape: f32[2,1,8], index: 8, kind: output, shape index: {1}]
  %9 = xla_tuple %s7, %s8
  %s10 = sld [smem:[#allocation0]]
  $region62: #{tpu_custom_call.1} parent=0
    _
  %s12 = ssub.s32 1, %s10
  %s13 = scalar_select 0, %s12, %s10
  $region1: #{tpu_custom_call.1} parent=0
    #allocation2 [shape = 'u8[1024]{0}', space=vmem, size = 0x400, scoped, tag = 'input window, operand 0, single buffered']
    #allocation3 [shape = 's32[1]{0}', space=sflag, size = 0x4, scoped, tag = 'scoped memory for tpu_custom_call.1']
    #allocation4 [shape = 's32[1]{0}', space=sflag, size = 0x4, scoped, tag = 'scoped memory for tpu_custom_call.1']
    #allocation5 [shape = 'u8[8192]{0}', space=vmem, size = 0x2000, scoped, tag = 'input window, operand 1, single buffered']
    #allocation6 [shape = 's32[1]{0}', space=sflag, size = 0x4, scoped, tag = 'scoped memory for tpu_custom_call.1']
    #allocation7 [shape = 'u8[8192]{0}', space=vmem, size = 0x2000, scoped, tag = 'input window, operand 2, single buffered']
    #allocation8 [shape = 'u8[16384]{0}', space=vmem, size = 0x4000, scoped, tag = 'input window, operand 4, single buffered']
    #allocation9 [shape = 's32[1]{0}', space=sflag, size = 0x4, scoped, tag = 'scoped memory for tpu_custom_call.1']
    #allocation10 [shape = 'u8[1024]{0}', space=vmem, size = 0x400, scoped, tag = 'output window, operand 0, single buffered']
    #allocation11 [shape = 'u8[1024]{0}', space=vmem, size = 0x400, scoped, tag = 'output window, operand 1, single buffered']
    #allocation12 [shape = 's32[1]{0}', space=sflag, size = 0x4, scoped, tag = 'scoped memory for tpu_custom_call.1']
    %14 = vsyncpa [#allocation3], 0
    %15 = vsyncpa [#allocation6], 0
    %16 = vsyncpa [#allocation9], 0
    %17 = vsyncpa [#allocation4], 0
    %18 = vsyncpa [#allocation12], 0
    // Predicated region
    $region2: #{tpu_custom_call.1} parent=1 // pred_check
      _
    $region3: #{tpu_custom_call.1} parent=1 // pred_check_branch
      %20 = sbr.rel (0) target = $region5
    $region4: #{tpu_custom_call.1} parent=1 // pred_region
      %s22 = ssub.s32 32, 32
      %23 = vsyncadd [#allocation3], %s22
      %s24 = sshll.u32 [#allocation2], 4
      %s25 = int_to_ptr.vmem [resolvable:$true] %s24
      %30 = dma.hbm_to_vmem [thread:$0]  %s0, 32, %s25, [#allocation3], 16, 16, 1
    $region5: #{tpu_custom_call.1} parent=1 // pred_fallthru
      _
    // Predicated region
    $region6: #{tpu_custom_call.1} parent=1 // pred_check
      _
    $region7: #{tpu_custom_call.1} parent=1 // pred_check_branch
      %32 = sbr.rel (0) target = $region9
    $region8: #{tpu_custom_call.1} parent=1 // pred_region
      %s34 = ssub.s32 256, 256
      %35 = vsyncadd [#allocation6], %s34
      %s36 = sshll.u32 [#allocation5], 4
      %s37 = int_to_ptr.vmem [resolvable:$true] %s36
      %42 = dma.hbm_to_vmem [thread:$0]  %s1, 256, %s37, [#allocation6], 128, 128, 8
    $region9: #{tpu_custom_call.1} parent=1 // pred_fallthru
      _
    // Predicated region
    $region10: #{tpu_custom_call.1} parent=1 // pred_check
      _
    $region11: #{tpu_custom_call.1} parent=1 // pred_check_branch
      %44 = sbr.rel (0) target = $region13
    $region12: #{tpu_custom_call.1} parent=1 // pred_region
      %s46 = ssub.s32 256, 256
      %47 = vsyncadd [#allocation6], %s46
      %s48 = sshll.u32 [#allocation7], 4
      %s49 = int_to_ptr.vmem [resolvable:$true] %s48
      %54 = dma.hbm_to_vmem [thread:$0]  %s2, 256, %s49, [#allocation6], 128, 128, 8
    $region13: #{tpu_custom_call.1} parent=1 // pred_fallthru
      _
    // Predicated region
    $region14: #{tpu_custom_call.1} parent=1 // pred_check
      _
    $region15: #{tpu_custom_call.1} parent=1 // pred_check_branch
      %56 = sbr.rel (0) target = $region17
    $region16: #{tpu_custom_call.1} parent=1 // pred_region
      _
    $region17: #{tpu_custom_call.1} parent=1 // pred_fallthru
      _
    // Predicated region
    $region18: #{tpu_custom_call.1} parent=1 // pred_check
      _
    $region19: #{tpu_custom_call.1} parent=1 // pred_check_branch
      %58 = sbr.rel (0) target = $region21
    $region20: #{tpu_custom_call.1} parent=1 // pred_region
      %s60 = ssub.s32 512, 512
      %61 = vsyncadd [#allocation9], %s60
      %s62 = sshll.u32 [#allocation8], 4
      %s63 = int_to_ptr.vmem [resolvable:$true] %s62
      %68 = dma.hbm_to_vmem [thread:$0]  %s4, 512, %s63, [#allocation9], 128, 128, 8
    $region21: #{tpu_custom_call.1} parent=1 // pred_fallthru
      _
    // Predicated region
    $region22: #{tpu_custom_call.1} parent=1 // pred_check
      _
    $region23: #{tpu_custom_call.1} parent=1 // pred_check_branch
      %70 = sbr.rel (0) target = $region25
    $region24: #{tpu_custom_call.1} parent=1 // pred_region
      _
    $region25: #{tpu_custom_call.1} parent=1 // pred_fallthru
      _
    // Predicated region
    $region26: #{tpu_custom_call.1} parent=1 // pred_check
      _
    $region27: #{tpu_custom_call.1} parent=1 // pred_check_branch
      %72 = sbr.rel (0) target = $region29
    $region28: #{tpu_custom_call.1} parent=1 // pred_region
      _
    $region29: #{tpu_custom_call.1} parent=1 // pred_fallthru
      _
    // Predicated region
    $region30: #{tpu_custom_call.1} parent=1 // pred_check
      _
    $region31: #{tpu_custom_call.1} parent=1 // pred_check_branch
      %74 = sbr.rel (0) target = $region33
    $region32: #{tpu_custom_call.1} parent=1 // pred_region
      %75 = dma.done [#allocation3], 32
    $region33: #{tpu_custom_call.1} parent=1 // pred_fallthru
      _
    // Predicated region
    $region34: #{tpu_custom_call.1} parent=1 // pred_check
      _
    $region35: #{tpu_custom_call.1} parent=1 // pred_check_branch
      %77 = sbr.rel (0) target = $region37
    $region36: #{tpu_custom_call.1} parent=1 // pred_region
      %78 = dma.done [#allocation6], 256
    $region37: #{tpu_custom_call.1} parent=1 // pred_fallthru
      _
    // Predicated region
    $region38: #{tpu_custom_call.1} parent=1 // pred_check
      _
    $region39: #{tpu_custom_call.1} parent=1 // pred_check_branch
      %80 = sbr.rel (0) target = $region41
    $region40: #{tpu_custom_call.1} parent=1 // pred_region
      %81 = dma.done [#allocation6], 256
    $region41: #{tpu_custom_call.1} parent=1 // pred_fallthru
      _
    // Predicated region
    $region42: #{tpu_custom_call.1} parent=1 // pred_check
      _
    $region43: #{tpu_custom_call.1} parent=1 // pred_check_branch
      %83 = sbr.rel (0) target = $region45
    $region44: #{tpu_custom_call.1} parent=1 // pred_region
      %84 = dma.done [#allocation9], 512
    $region45: #{tpu_custom_call.1} parent=1 // pred_fallthru
      _
    %v85 = vld [vmem:[#allocation2] sm:$0x1]
    %v86 = vld [vmem:[#allocation2 + $0x1] sm:$0x1]
    %v87 = vld [vmem:[#allocation5] sm:$0xff]
    %v88 = vld [vmem:[#allocation5 + $0x8] sm:$0xff]
    %v89 = vld [vmem:[#allocation7] sm:$0xff]
    %v90 = vld [vmem:[#allocation7 + $0x8] sm:$0xff]
    %v91 = vld [vmem:[%s3] sm:$0x1]
    %v93 = vlaneseq
    %v94 = vshrl.u32 %v93, 7
    %v95 = vsub.s32 0, %v94
    %v96 = vrot.slane %v91, %v95
    %v100 = vcombine.low %v85, %v86
    %v102 = vunpack.c.l.s4 1966171168
    %v103 = vunpack.c.0.s8 %v102
    %v104 = vlaneseq
    %v105 = vshrl.u32 %v104, 7
    %v106 = vsub.s32 %v103, %v105
    %v107 = vrot.slane %v100, %v106
    %v109 = vunpack.c.l.s4 1966171168
    %v110 = vunpack.c.0.s8 %v109
    %v111 = vlaneseq
    %v112 = vshrl.u32 %v111, 7
    %v113 = vsub.s32 %v110, %v112
    %v114 = vrot.slane %v107, %v113
    %vm115 = vcmask 130048
    %v116 = vsel %vm115, %v114, 0
    %118 = vmatprep.subr.mxu0 0.0
    %119 = vmatpush1.msra.mxu0 %v89
    %120 = vmatprep.subr.mxu0 0.0
    %121 = vmatpush1.msra.mxu0 %v90
    %122 = vmatprep.subr.mxu0 0.0
    %123 = vmatpush1.msra.mxu0 0.0
    %124 = vmatprep.subr.mxu0 0.0
    %125 = vmatpush1.msra.mxu0 0.0
    %126 = vmatprep.subr.mxu0 0.0
    %127 = vmatpush1.msra.mxu0 0.0
    %128 = vmatprep.subr.mxu0 0.0
    %129 = vmatpush1.msra.mxu0 0.0
    %130 = vmatprep.subr.mxu0 0.0
    %131 = vmatpush1.msra.mxu0 0.0
    %132 = vmatprep.subr.mxu0 0.0
    %133 = vmatpush1.msra.mxu0 0.0
    %134 = vmatprep.subr.mxu0 0.0
    %135 = vmatpush1.msra.mxu0 0.0
    %136 = vmatprep.subr.mxu0 0.0
    %137 = vmatpush1.msra.mxu0 0.0
    %138 = vmatprep.subr.mxu0 0.0
    %139 = vmatpush1.msra.mxu0 0.0
    %140 = vmatprep.subr.mxu0 0.0
    %141 = vmatpush1.msra.mxu0 0.0
    %142 = vmatprep.subr.mxu0 0.0
    %143 = vmatpush1.msra.mxu0 0.0
    %144 = vmatprep.subr.mxu0 0.0
    %145 = vmatpush1.msra.mxu0 0.0
    %146 = vmatprep.subr.mxu0 0.0
    %147 = vmatpush1.msra.mxu0 0.0
    %148 = vmatprep.subr.mxu0 0.0
    %149 = vmatpush1.msra.mxu0 0.0
    %150 = vmatprep.subr.mxu0 0.0
    %151 = vmatpush1.msra.mxu0 0.0
    %152 = vmatprep.subr.mxu0 0.0
    %153 = vmatpush1.msra.mxu0 0.0
    %154 = vmatprep.subr.mxu0 0.0
    %155 = vmatpush1.msra.mxu0 0.0
    %156 = vmatprep.subr.mxu0 0.0
    %157 = vmatpush1.msra.mxu0 0.0
    %158 = vmatprep.subr.mxu0 0.0
    %159 = vmatpush1.msra.mxu0 0.0
    %160 = vmatprep.subr.mxu0 0.0
    %161 = vmatpush1.msra.mxu0 0.0
    %162 = vmatprep.subr.mxu0 0.0
    %163 = vmatpush1.msra.mxu0 0.0
    %164 = vmatprep.subr.mxu0 0.0
    %165 = vmatpush1.msra.mxu0 0.0
    %166 = vmatprep.subr.mxu0 0.0
    %167 = vmatpush1.msra.mxu0 0.0
    %168 = vmatprep.subr.mxu0 0.0
    %169 = vmatpush1.msra.mxu0 0.0
    %170 = vmatprep.subr.mxu0 0.0
    %171 = vmatpush1.msra.mxu0 0.0
    %172 = vmatprep.subr.mxu0 0.0
    %173 = vmatpush1.msra.mxu0 0.0
    %174 = vmatprep.subr.mxu0 0.0
    %175 = vmatpush1.msra.mxu0 0.0
    %176 = vmatprep.subr.mxu0 0.0
    %177 = vmatpush1.msra.mxu0 0.0
    %178 = vmatprep.subr.mxu0 0.0
    %179 = vmatpush1.msra.mxu0 0.0
    %180 = vmatprep.subr.mxu0 0.0
    %181 = vmatpush1.msra.mxu0 0.0
    %182 = vmatprep.mubr.f32.mxu0 0.0
    %183 = vmatmul.mubr.f32.gmra.mrb[0].mxu0 %v116
    %v184 = vpop.f32.mrb[0].mxu0
    %v185 = vadd.f32 %v96, %v184
    %v186 = vpop.f32.mrb[0].mxu0
    %187 = vdwg.mxu0
    %v188 = vld [vmem:[#allocation8] sm:$0xff]
    %v189 = vld [vmem:[#allocation8 + $0x8] sm:$0xff]
    %v190 = vld [vmem:[#allocation8 + $0x10] sm:$0xff]
    %v191 = vld [vmem:[#allocation8 + $0x18] sm:$0xff]
    %vm192 = vcmask 261120
    %v194 = vsel %vm192, %v87, 0
    %v197 = vsel %vm192, %v88, 0
    %199 = vmatprep.subr.mxu0 0.0
    %200 = vmatpush1.msra.mxu0 %v188
    %201 = vmatprep.subr.mxu0 0.0
    %202 = vmatpush1.msra.mxu0 %v189
    %203 = vmatprep.subr.mxu0 0.0
    %204 = vmatpush1.msra.mxu0 %v190
    %205 = vmatprep.subr.mxu0 0.0
    %206 = vmatpush1.msra.mxu0 %v191
    %207 = vmatprep.subr.mxu0 0.0
    %208 = vmatpush1.msra.mxu0 0.0
    %209 = vmatprep.subr.mxu0 0.0
    %210 = vmatpush1.msra.mxu0 0.0
    %211 = vmatprep.subr.mxu0 0.0
    %212 = vmatpush1.msra.mxu0 0.0
    %213 = vmatprep.subr.mxu0 0.0
    %214 = vmatpush1.msra.mxu0 0.0
    %215 = vmatprep.subr.mxu0 0.0
    %216 = vmatpush1.msra.mxu0 0.0
    %217 = vmatprep.subr.mxu0 0.0
    %218 = vmatpush1.msra.mxu0 0.0
    %219 = vmatprep.subr.mxu0 0.0
    %220 = vmatpush1.msra.mxu0 0.0
    %221 = vmatprep.subr.mxu0 0.0
    %222 = vmatpush1.msra.mxu0 0.0
    %223 = vmatprep.subr.mxu0 0.0
    %224 = vmatpush1.msra.mxu0 0.0
    %225 = vmatprep.subr.mxu0 0.0
    %226 = vmatpush1.msra.mxu0 0.0
    %227 = vmatprep.subr.mxu0 0.0
    %228 = vmatpush1.msra.mxu0 0.0
    %229 = vmatprep.subr.mxu0 0.0
    %230 = vmatpush1.msra.mxu0 0.0
    %231 = vmatprep.subr.mxu0 0.0
    %232 = vmatpush1.msra.mxu0 0.0
    %233 = vmatprep.subr.mxu0 0.0
    %234 = vmatpush1.msra.mxu0 0.0
    %235 = vmatprep.subr.mxu0 0.0
    %236 = vmatpush1.msra.mxu0 0.0
    %237 = vmatprep.subr.mxu0 0.0
    %238 = vmatpush1.msra.mxu0 0.0
    %239 = vmatprep.subr.mxu0 0.0
    %240 = vmatpush1.msra.mxu0 0.0
    %241 = vmatprep.subr.mxu0 0.0
    %242 = vmatpush1.msra.mxu0 0.0
    %243 = vmatprep.subr.mxu0 0.0
    %244 = vmatpush1.msra.mxu0 0.0
    %245 = vmatprep.subr.mxu0 0.0
    %246 = vmatpush1.msra.mxu0 0.0
    %247 = vmatprep.subr.mxu0 0.0
    %248 = vmatpush1.msra.mxu0 0.0
    %249 = vmatprep.subr.mxu0 0.0
    %250 = vmatpush1.msra.mxu0 0.0
    %251 = vmatprep.subr.mxu0 0.0
    %252 = vmatpush1.msra.mxu0 0.0
    %253 = vmatprep.subr.mxu0 0.0
    %254 = vmatpush1.msra.mxu0 0.0
    %255 = vmatprep.subr.mxu0 0.0
    %256 = vmatpush1.msra.mxu0 0.0
    %257 = vmatprep.subr.mxu0 0.0
    %258 = vmatpush1.msra.mxu0 0.0
    %259 = vmatprep.subr.mxu0 0.0
    %260 = vmatpush1.msra.mxu0 0.0
    %261 = vmatprep.subr.mxu0 0.0
    %262 = vmatpush1.msra.mxu0 0.0
    %263 = vmatprep.mubr.f32.mxu0 0.0
    %264 = vmatmul.mubr.f32.gmra.mrb[0].mxu0 %v194
    %v265 = vpop.f32.mrb[0].mxu0
    %v266 = vadd.f32 0.0, %v265
    %v267 = vpop.f32.mrb[0].mxu0
    %268 = vmatprep.mubr.f32.mxu0 0.0
    %269 = vmatmul.mubr.f32.gmra.mrb[0].mxu0 %v197
    %v270 = vpop.f32.mrb[0].mxu0
    %v271 = vadd.f32 0.0, %v270
    %v272 = vpop.f32.mrb[0].mxu0
    %273 = vdwg.mxu0
    %v274 = vld [vmem:[%s5] sm:$0x1]
    %v276 = vlaneseq
    %v277 = vshrl.u32 %v276, 7
    %v278 = vsub.s32 0, %v277
    %v279 = vrot.slane %v274, %v278
    %v281 = vadd.f32 %v266, %v279
    %v282 = vadd.f32 %v271, %v279
    %v285 = vunpack.c.l.s4 1966171168
    %v286 = vunpack.c.0.s8 %v285
    %v287 = vlaneseq
    %v288 = vshrl.u32 %v287, 7
    %v289 = vsub.s32 %v286, %v288
    %v290 = vrot.slane %v185, %v289
    %v291 = vcombine.high %v290, %v290
    %v293 = vunpack.c.l.s4 1966171168
    %v294 = vunpack.c.0.s8 %v293
    %v295 = vlaneseq
    %v296 = vshrl.u32 %v295, 7
    %v297 = vsub.s32 %v294, %v296
    %v298 = vrot.slane %v290, %v297
    %v300 = vunpack.c.l.s4 1966171168
    %v301 = vunpack.c.0.s8 %v300
    %v302 = vlaneseq
    %v303 = vshrl.u32 %v302, 7
    %v304 = vsub.s32 %v301, %v303
    %v305 = vrot.slane %v291, %v304
    %v306 = vlaneseq
    %v307 = vshrl.u32 %v306, 7
    %v308 = vsub.s32 0, %v307
    %v309 = vrot.slane %v298, %v308
    %v310 = vlaneseq
    %v311 = vshrl.u32 %v310, 7
    %v312 = vsub.s32 0, %v311
    %v313 = vrot.slane %v305, %v312
    %v316 = vadd.f32 %v309, %v281
    %v317 = vadd.f32 %v313, %v282
    %v318 = vtanh.pop %v316
    %v319 = vtanh.pop %v317
    %v320 = vld [vmem:[%s6] sm:$0x1]
    %v322 = vlaneseq
    %v323 = vshrl.u32 %v322, 7
    %v324 = vsub.s32 0, %v323
    %v325 = vrot.slane %v320, %v324
    %v327 = vmul.f32 %v318, %v325
    %v328 = vmul.f32 %v319, %v325
    %v329 = vsel %vm192, %v327, 0.0
    %330 = vadd.xlane.f32.xlu0 %v329
    %v331 = vpop.xlane.xlu0 %330
    %v332 = vsel %vm192, %v328, 0.0
    %333 = vadd.xlane.f32.xlu0 %v332
    %v334 = vpop.xlane.xlu0 %333
    %v337 = vlaneseq
    %v338 = vand.u32 %v337, 127
    %v339 = vlaneseq
    %v340 = vshrl.u32 %v339, 7
    %v341 = vsub.s32 %v338, %v340
    %v342 = vrot.slane %v331, %v341
    %v343 = vlaneseq
    %v344 = vshrl.u32 %v343, 7
    %v345 = vsub.s32 %v338, %v344
    %v346 = vrot.slane %v334, %v345
    %vm347 = vcmask 1041409
    %v348 = vsel %vm347, %v346, %v342
    %vm350 = vcmask 58368
    %v351 = vsel %vm350, %v348, -inf
    %352 = vmax.xlane.f32.xlu0 %v351
    %v353 = vpop.xlane.xlu0 %352
    %v355 = vlaneseq
    %v356 = vshrl.u32 %v355, 7
    %v357 = vsub.s32 0, %v356
    %v358 = vrot.slane %v353, %v357
    %v359 = vlaneseq
    %v360 = vshrl.u32 %v359, 7
    %v361 = vsub.s32 1, %v360
    %v362 = vrot.slane %v353, %v361
    %v365 = vsub.f32 %v331, %v358
    %v366 = vsub.f32 %v334, %v362
    %v367 = vmul.f32 %v365, 1.442695
    %v368 = vpow.pop %v367
    %v369 = vmul.f32 %v366, 1.442695
    %v370 = vpow.pop %v369
    %373 = vset.pattern.permute.xlu0 0
    %374 = vperm.xlu0 %373, %v368
    %v375 = vpop.permute.xlu0 %374
    %376 = vset.pattern.permute.xlu0 0
    %377 = vperm.xlu0 %376, %v370
    %v378 = vpop.permute.xlu0 %377
    %v379 = vlaneseq
    %v380 = vshrl.u32 %v379, 7
    %v381 = vsub.s32 %v338, %v380
    %v382 = vrot.slane %v375, %v381
    %v383 = vlaneseq
    %v384 = vshrl.u32 %v383, 7
    %v385 = vsub.s32 %v338, %v384
    %v386 = vrot.slane %v378, %v385
    %v387 = vsel %vm347, %v386, %v382
    %v389 = vsel %vm350, %v387, 0.0
    %390 = vadd.xlane.f32.xlu0 %v389
    %v391 = vpop.xlane.xlu0 %390
    %v393 = vlaneseq
    %v394 = vshrl.u32 %v393, 7
    %v395 = vsub.s32 0, %v394
    %v396 = vrot.slane %v391, %v395
    %v397 = vlaneseq
    %v398 = vshrl.u32 %v397, 7
    %v399 = vsub.s32 1, %v398
    %v400 = vrot.slane %v391, %v399
    %v403 = vrcp.pop %v396
    %v404 = vmul.f32 %v368, %v403
    %v405 = vrcp.pop %v400
    %v406 = vmul.f32 %v370, %v405
    %408 = vset.pattern.permute.xlu0 0
    %409 = vperm.xlu0 %408, %v404
    %v410 = vpop.permute.xlu0 %409
    %v411 = vlaneseq
    %v412 = vshrl.u32 %v411, 7
    %v413 = vsub.s32 %v338, %v412
    %v414 = vrot.slane %v410, %v413
    %vm415 = vcmask 64512
    %v416 = vsel %vm415, %v414, 0
    %418 = vmatprep.subr.mxu0 0.0
    %419 = vmatpush1.msra.mxu0 %v87
    %420 = vmatprep.subr.mxu0 0.0
    %421 = vmatpush1.msra.mxu0 0.0
    %422 = vmatprep.subr.mxu0 0.0
    %423 = vmatpush1.msra.mxu0 0.0
    %424 = vmatprep.subr.mxu0 0.0
    %425 = vmatpush1.msra.mxu0 0.0
    %426 = vmatprep.subr.mxu0 0.0
    %427 = vmatpush1.msra.mxu0 0.0
    %428 = vmatprep.subr.mxu0 0.0
    %429 = vmatpush1.msra.mxu0 0.0
    %430 = vmatprep.subr.mxu0 0.0
    %431 = vmatpush1.msra.mxu0 0.0
    %432 = vmatprep.subr.mxu0 0.0
    %433 = vmatpush1.msra.mxu0 0.0
    %434 = vmatprep.subr.mxu0 0.0
    %435 = vmatpush1.msra.mxu0 0.0
    %436 = vmatprep.subr.mxu0 0.0
    %437 = vmatpush1.msra.mxu0 0.0
    %438 = vmatprep.subr.mxu0 0.0
    %439 = vmatpush1.msra.mxu0 0.0
    %440 = vmatprep.subr.mxu0 0.0
    %441 = vmatpush1.msra.mxu0 0.0
    %442 = vmatprep.subr.mxu0 0.0
    %443 = vmatpush1.msra.mxu0 0.0
    %444 = vmatprep.subr.mxu0 0.0
    %445 = vmatpush1.msra.mxu0 0.0
    %446 = vmatprep.subr.mxu0 0.0
    %447 = vmatpush1.msra.mxu0 0.0
    %448 = vmatprep.subr.mxu0 0.0
    %449 = vmatpush1.msra.mxu0 0.0
    %450 = vmatprep.subr.mxu0 0.0
    %451 = vmatpush1.msra.mxu0 0.0
    %452 = vmatprep.subr.mxu0 0.0
    %453 = vmatpush1.msra.mxu0 0.0
    %454 = vmatprep.subr.mxu0 0.0
    %455 = vmatpush1.msra.mxu0 0.0
    %456 = vmatprep.subr.mxu0 0.0
    %457 = vmatpush1.msra.mxu0 0.0
    %458 = vmatprep.subr.mxu0 0.0
    %459 = vmatpush1.msra.mxu0 0.0
    %460 = vmatprep.subr.mxu0 0.0
    %461 = vmatpush1.msra.mxu0 0.0
    %462 = vmatprep.subr.mxu0 0.0
    %463 = vmatpush1.msra.mxu0 0.0
    %464 = vmatprep.subr.mxu0 0.0
    %465 = vmatpush1.msra.mxu0 0.0
    %466 = vmatprep.subr.mxu0 0.0
    %467 = vmatpush1.msra.mxu0 0.0
    %468 = vmatprep.subr.mxu0 0.0
    %469 = vmatpush1.msra.mxu0 0.0
    %470 = vmatprep.subr.mxu0 0.0
    %471 = vmatpush1.msra.mxu0 0.0
    %472 = vmatprep.subr.mxu0 0.0
    %473 = vmatpush1.msra.mxu0 0.0
    %474 = vmatprep.subr.mxu0 0.0
    %475 = vmatpush1.msra.mxu0 0.0
    %476 = vmatprep.subr.mxu0 0.0
    %477 = vmatpush1.msra.mxu0 0.0
    %478 = vmatprep.subr.mxu0 0.0
    %479 = vmatpush1.msra.mxu0 0.0
    %480 = vmatprep.subr.mxu0 0.0
    %481 = vmatpush1.msra.mxu0 0.0
    %482 = vmatprep.mubr.f32.mxu0 0.0
    %483 = vmatmul.mubr.f32.gmra.mrb[0].mxu0 %v416
    %v484 = vpop.f32.mrb[0].mxu0
    %v485 = vadd.f32 0.0, %v484
    %v486 = vpop.f32.mrb[0].mxu0
    %487 = vdwg.mxu0
    %489 = vset.pattern.permute.xlu0 0
    %490 = vperm.xlu0 %489, %v406
    %v491 = vpop.permute.xlu0 %490
    %v492 = vlaneseq
    %v493 = vshrl.u32 %v492, 7
    %v494 = vsub.s32 %v338, %v493
    %v495 = vrot.slane %v491, %v494
    %v496 = vsel %vm415, %v495, 0
    %498 = vmatprep.subr.mxu0 0.0
    %499 = vmatpush1.msra.mxu0 %v88
    %500 = vmatprep.subr.mxu0 0.0
    %501 = vmatpush1.msra.mxu0 0.0
    %502 = vmatprep.subr.mxu0 0.0
    %503 = vmatpush1.msra.mxu0 0.0
    %504 = vmatprep.subr.mxu0 0.0
    %505 = vmatpush1.msra.mxu0 0.0
    %506 = vmatprep.subr.mxu0 0.0
    %507 = vmatpush1.msra.mxu0 0.0
    %508 = vmatprep.subr.mxu0 0.0
    %509 = vmatpush1.msra.mxu0 0.0
    %510 = vmatprep.subr.mxu0 0.0
    %511 = vmatpush1.msra.mxu0 0.0
    %512 = vmatprep.subr.mxu0 0.0
    %513 = vmatpush1.msra.mxu0 0.0
    %514 = vmatprep.subr.mxu0 0.0
    %515 = vmatpush1.msra.mxu0 0.0
    %516 = vmatprep.subr.mxu0 0.0
    %517 = vmatpush1.msra.mxu0 0.0
    %518 = vmatprep.subr.mxu0 0.0
    %519 = vmatpush1.msra.mxu0 0.0
    %520 = vmatprep.subr.mxu0 0.0
    %521 = vmatpush1.msra.mxu0 0.0
    %522 = vmatprep.subr.mxu0 0.0
    %523 = vmatpush1.msra.mxu0 0.0
    %524 = vmatprep.subr.mxu0 0.0
    %525 = vmatpush1.msra.mxu0 0.0
    %526 = vmatprep.subr.mxu0 0.0
    %527 = vmatpush1.msra.mxu0 0.0
    %528 = vmatprep.subr.mxu0 0.0
    %529 = vmatpush1.msra.mxu0 0.0
    %530 = vmatprep.subr.mxu0 0.0
    %531 = vmatpush1.msra.mxu0 0.0
    %532 = vmatprep.subr.mxu0 0.0
    %533 = vmatpush1.msra.mxu0 0.0
    %534 = vmatprep.subr.mxu0 0.0
    %535 = vmatpush1.msra.mxu0 0.0
    %536 = vmatprep.subr.mxu0 0.0
    %537 = vmatpush1.msra.mxu0 0.0
    %538 = vmatprep.subr.mxu0 0.0
    %539 = vmatpush1.msra.mxu0 0.0
    %540 = vmatprep.subr.mxu0 0.0
    %541 = vmatpush1.msra.mxu0 0.0
    %542 = vmatprep.subr.mxu0 0.0
    %543 = vmatpush1.msra.mxu0 0.0
    %544 = vmatprep.subr.mxu0 0.0
    %545 = vmatpush1.msra.mxu0 0.0
    %546 = vmatprep.subr.mxu0 0.0
    %547 = vmatpush1.msra.mxu0 0.0
    %548 = vmatprep.subr.mxu0 0.0
    %549 = vmatpush1.msra.mxu0 0.0
    %550 = vmatprep.subr.mxu0 0.0
    %551 = vmatpush1.msra.mxu0 0.0
    %552 = vmatprep.subr.mxu0 0.0
    %553 = vmatpush1.msra.mxu0 0.0
    %554 = vmatprep.subr.mxu0 0.0
    %555 = vmatpush1.msra.mxu0 0.0
    %556 = vmatprep.subr.mxu0 0.0
    %557 = vmatpush1.msra.mxu0 0.0
    %558 = vmatprep.subr.mxu0 0.0
    %559 = vmatpush1.msra.mxu0 0.0
    %560 = vmatprep.subr.mxu0 0.0
    %561 = vmatpush1.msra.mxu0 0.0
    %562 = vmatprep.mubr.f32.mxu0 0.0
    %563 = vmatmul.mubr.f32.gmra.mrb[0].mxu0 %v496
    %v564 = vpop.f32.mrb[0].mxu0
    %v565 = vadd.f32 0.0, %v564
    %v566 = vpop.f32.mrb[0].mxu0
    %567 = vdwg.mxu0
    %vm568 = vcmask 253952
    %569 = vst.msk [vmem:[#allocation10] sm:$0x1] %vm568, %v485
    %570 = vst.msk [vmem:[#allocation10 + $0x1] sm:$0x1] %vm568, %v565
    %vm573 = vcmask 57344
    %574 = vst.msk [vmem:[#allocation11] sm:$0x1] %vm573, %v414
    %575 = vst.msk [vmem:[#allocation11 + $0x1] sm:$0x1] %vm573, %v495
    // Predicated region
    $region46: #{tpu_custom_call.1} parent=1 // pred_check
      _
    $region47: #{tpu_custom_call.1} parent=1 // pred_check_branch
      %577 = sbr.rel (0) target = $region49
    $region48: #{tpu_custom_call.1} parent=1 // pred_region
      %s579 = ssub.s32 32, 32
      %580 = vsyncadd [#allocation4], %s579
      %s581 = sshll.u32 [#allocation10], 4
      %s582 = int_to_ptr.vmem [resolvable:$true] %s581
      %587 = dma.vmem_to_hbm [thread:$0]  %s582, 32, %s7, [#allocation4], 16, 16, 1
    $region49: #{tpu_custom_call.1} parent=1 // pred_fallthru
      _
    // Predicated region
    $region50: #{tpu_custom_call.1} parent=1 // pred_check
      _
    $region51: #{tpu_custom_call.1} parent=1 // pred_check_branch
      %589 = sbr.rel (0) target = $region53
    $region52: #{tpu_custom_call.1} parent=1 // pred_region
      %s591 = ssub.s32 32, 32
      %592 = vsyncadd [#allocation12], %s591
      %s593 = sshll.u32 [#allocation11], 4
      %s594 = int_to_ptr.vmem [resolvable:$true] %s593
      %599 = dma.vmem_to_hbm [thread:$0]  %s594, 32, %s8, [#allocation12], 16, 16, 1
    $region53: #{tpu_custom_call.1} parent=1 // pred_fallthru
      _
    // Predicated region
    $region54: #{tpu_custom_call.1} parent=1 // pred_check
      _
    $region55: #{tpu_custom_call.1} parent=1 // pred_check_branch
      %601 = sbr.rel (0) target = $region57
    $region56: #{tpu_custom_call.1} parent=1 // pred_region
      %602 = dma.done [#allocation4], 32
    $region57: #{tpu_custom_call.1} parent=1 // pred_fallthru
      _
    // Predicated region
    $region58: #{tpu_custom_call.1} parent=1 // pred_check
      _
    $region59: #{tpu_custom_call.1} parent=1 // pred_check_branch
      %604 = sbr.rel (0) target = $region61
    $region60: #{tpu_custom_call.1} parent=1 // pred_region
      %605 = dma.done [#allocation12], 32
    $region61: #{tpu_custom_call.1} parent=1 // pred_fallthru
      _
    %606 = vsyncpa [#allocation3], 1
    %607 = vsyncpa [#allocation6], 1
    %608 = vsyncpa [#allocation9], 1
    %609 = vsyncpa [#allocation4], 1
    %610 = vsyncpa [#allocation12], 1

</llo_original>
